<compile_context>
chip_gen: v7x
topology: tpu7x:2x2x1
jax: 0.10.0
libtpu: 0.0.40
codegen_flags: <defaults>
</compile_context>

<pallas_src>
import functools

import jax
import jax.numpy as jnp
from jax.experimental import pallas as pl
from jax.experimental.pallas import tpu as pltpu


def _pick_lane_tile(chw, target=8192):
    """Largest multiple-of-128 divisor of chw that is <= target (None if chw
    itself is not 128-aligned)."""
    if chw % 128 != 0:
        return None
    if chw <= target:
        return chw
    best = 128
    t = 128
    while t <= target:
        if chw % t == 0:
            best = t
        t += 128
    return best


def _mbstd_kernel(x_ref, o_ref, acc_ref, *, G, F, c, HW, TL):
    # x_ref  : (G, TL)       one lane tile of group m (sublane = group member)
    # o_ref  : (G, L_out)    full output lanes of group m (resident over axis 1)
    # acc_ref: SMEM (F,) f32 running sum of per-position std for each f
    li = pl.program_id(1)
    n_l = pl.num_programs(1)
    chw = c * HW
    L_in = F * chw
    tiles_per_f = chw // TL            # static; lane tiles never straddle an f

    @pl.when(li == 0)
    def _init():
        for f in range(F):
            acc_ref[f] = jnp.float32(0.0)

    # ---- group statistics for this lane tile (biased variance over G) ----
    xt = x_ref[...]                                    # (G, TL), input dtype
    xf = xt.astype(jnp.float32)
    mu = jnp.mean(xf, axis=0, keepdims=True)           # (1, TL)
    d = xf - mu
    var = jnp.mean(d * d, axis=0, keepdims=True)       # (1, TL)
    std = jnp.sqrt(var + 1e-8)                         # (1, TL)
    tile_sum = jnp.sum(std)                            # f32 scalar

    if F == 1:
        acc_ref[0] = acc_ref[0] + tile_sum
    else:
        f_idx = li // tiles_per_f
        for f in range(F):
            @pl.when(f_idx == f)
            def _acc(f=f):
                acc_ref[f] = acc_ref[f] + tile_sum

    # ---- fused pass-through copy of this tile into the output ----
    off = pl.multiple_of(li * TL, 128)
    o_ref[:, pl.ds(off, TL)] = xt.astype(o_ref.dtype)

    # ---- finalize: broadcast the mean std into the trailing F channels ----
    @pl.when(li == n_l - 1)
    def _finalize():
        inv = jnp.float32(1.0 / chw)
        for f in range(F):
            stat = acc_ref[f] * inv                    # scalar: mean std
            o_ref[:, L_in + f * HW:L_in + (f + 1) * HW] = (
                jnp.broadcast_to(stat, (G, HW)).astype(o_ref.dtype))


def _mbstd_whole_kernel(x_ref, o_ref, *, G, NG, F, c, HW):
    # Fallback: whole arrays resident; handles non-128-aligned lane extents.
    chw = c * HW
    L_in = F * chw
    L_out = L_in + F * HW
    xf = x_ref[...].astype(jnp.float32)                # (G, NG*L_in)
    for m in range(NG):
        xm = xf[:, m * L_in:(m + 1) * L_in]            # (G, L_in)
        mu = jnp.mean(xm, axis=0, keepdims=True)
        d = xm - mu
        std = jnp.sqrt(jnp.mean(d * d, axis=0, keepdims=True) + 1e-8)  # (1, L_in)
        o_ref[:, m * L_out:m * L_out + L_in] = x_ref[:, m * L_in:(m + 1) * L_in]
        for f in range(F):
            stat = jnp.mean(std[:, f * chw:(f + 1) * chw])
            o_ref[:, m * L_out + L_in + f * HW:
                     m * L_out + L_in + (f + 1) * HW] = (
                jnp.broadcast_to(stat, (G, HW)).astype(o_ref.dtype))


def minibatch_std_layer(x, group_size, num_channels=1):
    """Fused Pallas implementation of MinibatchStdLayer.forward (NCHW input)."""
    N, C, H, W = x.shape
    G = int(min(group_size, N)) if group_size is not None else N
    F = int(num_channels)
    assert N % G == 0, "batch size must be divisible by (clamped) group_size"
    assert C % F == 0, "channels must be divisible by num_channels"
    NG = N // G
    c = C // F
    HW = H * W
    chw = c * HW                  # reduction extent per std channel
    L_in = C * HW                 # lanes per sample: input view
    L_out = (C + F) * HW          # lanes per sample: output (x ++ std channels)

    # Pure view: (N, C, H, W) -> (G, NG * C*H*W).  Row = group-member index g;
    # the m-th L_in-wide lane chunk of row g is sample g*NG + m, matching
    # torch's x.reshape(G, -1, F, c, H, W) memory order.
    xg = x.reshape(G, NG * L_in)

    TL = _pick_lane_tile(chw)
    tiled_ok = (TL is not None) and (NG == 1 or L_out % 128 == 0)

    if tiled_ok:
        n_l = F * (chw // TL)     # lane tiles per group
        kernel = functools.partial(_mbstd_kernel, G=G, F=F, c=c, HW=HW, TL=TL)
        out = pl.pallas_call(
            kernel,
            out_shape=jax.ShapeDtypeStruct((G, NG * L_out), x.dtype),
            grid=(NG, n_l),
            in_specs=[pl.BlockSpec((G, TL), lambda m, l: (0, m * n_l + l))],
            out_specs=pl.BlockSpec((G, L_out), lambda m, l: (0, m)),
            scratch_shapes=[pltpu.SMEM((F,), jnp.float32)],
            compiler_params=pltpu.CompilerParams(
                dimension_semantics=("parallel", "arbitrary")),
        )(xg)
    else:
        # Non-128-aligned lane extents: single whole-array invocation.
        kernel = functools.partial(_mbstd_whole_kernel, G=G, NG=NG, F=F, c=c, HW=HW)
        out = pl.pallas_call(
            kernel,
            out_shape=jax.ShapeDtypeStruct((G, NG * L_out), x.dtype),
            grid=(1,),
            in_specs=[pl.BlockSpec((G, NG * L_in), lambda i: (0, 0))],
            out_specs=pl.BlockSpec((G, NG * L_out), lambda i: (0, 0)),
        )(xg)

    # Pure view back to NCHW with the extra std channel(s) appended.
    return out.reshape(N, C + F, H, W)


def minibatch_std_ref(x, group_size, num_channels=1):
    """Pure-JAX reference mirroring the PyTorch forward."""
    N, C, H, W = x.shape
    G = int(min(group_size, N)) if group_size is not None else N
    F = int(num_channels)
    c = C // F
    y = x.reshape(G, -1, F, c, H, W)
    y = y - y.mean(axis=0)
    y = jnp.mean(jnp.square(y), axis=0)
    y = jnp.sqrt(y + 1e-8)
    y = y.mean(axis=(2, 3, 4))
    y = y.reshape(-1, F, 1, 1)
    y = jnp.tile(y, (G, 1, H, W))
    return jnp.concatenate([x, y], axis=1)


if __name__ == "__main__":
    # MinibatchStdLayer has no learnable parameters; nothing to initialize.
    group_size = 2
    num_channels = 1

    key = jax.random.PRNGKey(0)
    x = jax.random.normal(key, (2, 4, 16, 16), dtype=jnp.float32)  # NCHW

    out = minibatch_std_layer(x, group_size, num_channels)
    out = jax.block_until_ready(out)

    ref = minibatch_std_ref(x, group_size, num_channels)
    assert out.shape == (2, 4 + num_channels, 16, 16), out.shape
    assert jnp.allclose(out, ref, atol=1e-5, rtol=1e-5), "mismatch vs reference"

    print("KERNEL_OK")
</pallas_src>

<mosaic_0001>
module attributes {stable_mosaic.version = 11 : i64} {
  func.func @_mbstd_kernel(%arg0: i32, %arg1: i32, %arg2: memref<2x1024xf32, #tpu.memory_space<vmem>>, %arg3: memref<2x1280xf32, #tpu.memory_space<vmem>>, %arg4: memref<1xf32, #tpu.memory_space<smem>>) attributes {dimension_semantics = [#tpu.dimension_semantics<parallel>, #tpu.dimension_semantics<arbitrary>], iteration_bounds = array<i64: 1, 1>, scalar_prefetch = 0 : i64, scratch_operands = 1 : i64, tpu.core_type = #tpu.core_type<tc>, window_params = [{transform_indices = @transform_0, window_bounds = array<i64: 2, 1024>}, {transform_indices = @transform_1, window_bounds = array<i64: 2, 1280>}]} {
    %c0_i32 = arith.constant 0 : i32
    %0 = arith.cmpi eq, %arg1, %c0_i32 : i32
    %1 = arith.extui %0 : i1 to i32
    %c0_i32_0 = arith.constant 0 : i32
    %2 = arith.cmpi ne, %1, %c0_i32_0 : i32
    scf.if %2 {
      %cst_12 = arith.constant 0.000000e+00 : f32
      %c0_13 = arith.constant 0 : index
      %32 = memref.load %arg4[%c0_13] : memref<1xf32, #tpu.memory_space<smem>>
      memref.store %cst_12, %arg4[%c0_13] : memref<1xf32, #tpu.memory_space<smem>>
    } else {
    }
    %c0 = arith.constant 0 : index
    %c0_1 = arith.constant 0 : index
    %3 = vector.load %arg2[%c0, %c0_1] : memref<2x1024xf32, #tpu.memory_space<vmem>>, vector<2x1024xf32>
    %cst = arith.constant dense<0.000000e+00> : vector<1024xf32>
    %4 = vector.multi_reduction <add>, %3, %cst [0] : vector<2x1024xf32> to vector<1024xf32>
    %5 = vector.shape_cast %4 : vector<1024xf32> to vector<1x1024xf32>
    %cst_2 = arith.constant 2.000000e+00 : f32
    %6 = vector.broadcast %cst_2 : f32 to vector<1x1024xf32>
    %7 = arith.divf %5, %6 : vector<1x1024xf32>
    %8 = vector.broadcast %7 : vector<1x1024xf32> to vector<2x1024xf32>
    %9 = arith.subf %3, %8 : vector<2x1024xf32>
    %10 = arith.mulf %9, %9 : vector<2x1024xf32>
    %cst_3 = arith.constant dense<0.000000e+00> : vector<1024xf32>
    %11 = vector.multi_reduction <add>, %10, %cst_3 [0] : vector<2x1024xf32> to vector<1024xf32>
    %12 = vector.shape_cast %11 : vector<1024xf32> to vector<1x1024xf32>
    %cst_4 = arith.constant 2.000000e+00 : f32
    %13 = vector.broadcast %cst_4 : f32 to vector<1x1024xf32>
    %14 = arith.divf %12, %13 : vector<1x1024xf32>
    %cst_5 = arith.constant 9.99999993E-9 : f32
    %15 = vector.broadcast %cst_5 : f32 to vector<1x1024xf32>
    %16 = arith.addf %14, %15 : vector<1x1024xf32>
    %17 = math.sqrt %16 : vector<1x1024xf32>
    %18 = vector.shape_cast %17 : vector<1x1024xf32> to vector<1x1x1024xf32>
    %cst_6 = arith.constant dense<0.000000e+00> : vector<1xf32>
    %19 = vector.multi_reduction <add>, %18, %cst_6 [1, 2] : vector<1x1x1024xf32> to vector<1xf32>
    %20 = vector.shape_cast %19 : vector<1xf32> to vector<1x1x1xf32>
    %21 = vector.extract %20[0, 0, 0] : f32 from vector<1x1x1xf32>
    %c0_7 = arith.constant 0 : index
    %22 = memref.load %arg4[%c0_7] : memref<1xf32, #tpu.memory_space<smem>>
    %23 = arith.addf %22, %21 : f32
    %c0_8 = arith.constant 0 : index
    %24 = memref.load %arg4[%c0_8] : memref<1xf32, #tpu.memory_space<smem>>
    memref.store %23, %arg4[%c0_8] : memref<1xf32, #tpu.memory_space<smem>>
    %c1024_i32 = arith.constant 1024 : i32
    %25 = arith.muli %arg1, %c1024_i32 : i32
    %26 = tpu.assume_multiple %25, 128 : i32
    %c0_9 = arith.constant 0 : index
    %27 = arith.index_cast %26 : i32 to index
    %28 = vector.load %arg3[%c0_9, %27] : memref<2x1280xf32, #tpu.memory_space<vmem>>, vector<2x1024xf32>
    tpu.vector_store %arg3[%c0_9, %27], %3 {strides = array<i32>} : memref<2x1280xf32, #tpu.memory_space<vmem>>, vector<2x1024xf32>,
    %c0_i32_10 = arith.constant 0 : i32
    %29 = arith.cmpi eq, %arg1, %c0_i32_10 : i32
    %30 = arith.extui %29 : i1 to i32
    %c0_i32_11 = arith.constant 0 : i32
    %31 = arith.cmpi ne, %30, %c0_i32_11 : i32
    scf.if %31 {
      %c0_12 = arith.constant 0 : index
      %32 = memref.load %arg4[%c0_12] : memref<1xf32, #tpu.memory_space<smem>>
      %cst_13 = arith.constant 9.765625E-4 : f32
      %33 = arith.mulf %32, %cst_13 : f32
      %34 = vector.broadcast %33 : f32 to vector<2x256xf32>
      %c0_14 = arith.constant 0 : index
      %c1024 = arith.constant 1024 : index
      %35 = vector.load %arg3[%c0_14, %c1024] : memref<2x1280xf32, #tpu.memory_space<vmem>>, vector<2x256xf32>
      tpu.vector_store %arg3[%c0_14, %c1024], %34 {strides = array<i32>} : memref<2x1280xf32, #tpu.memory_space<vmem>>, vector<2x256xf32>,
    } else {
    }
    return
  }
  func.func @transform_0(%arg0: i32, %arg1: i32) -> (i32, i32) {
    %c1_i32 = arith.constant 1 : i32
    %0 = arith.muli %arg0, %c1_i32 : i32
    %1 = arith.addi %0, %arg1 : i32
    %c0_i32 = arith.constant 0 : i32
    %c0_i32_0 = arith.constant 0 : i32
    return %c0_i32, %1 : i32, i32
  }
  func.func @transform_1(%arg0: i32, %arg1: i32) -> (i32, i32) {
    %c0_i32 = arith.constant 0 : i32
    %c0_i32_0 = arith.constant 0 : i32
    return %c0_i32, %arg0 : i32, i32
  }
}

</mosaic_0001>

<llo_original>
// kernel: tpu_custom_call.1
$region0: #{tpu_custom_call.1}
  #allocation0 [shape = 'u32[]', space=smem, size = 0x4, offset = 0x4, fixed_abs, tag = 'smem constant byte address 0x4 - core index']
  #allocation1 [shape = 'u32[144,128]{1,0:T(1,128)}', space=vmem, size = 0x12000, scoped, tag = 'internal scratch']
  #allocation2 [shape = 'f32[1]{0:T(128)}', space=smem, size = 0x200, scoped, tag = 'scratch operand']
  %s0 = inlined_call_operand.hbm [shape: f32[2,1024], index: 0, kind: input, shape index: {}]
  %s1 = inlined_call_operand.hbm [shape: f32[2,1280], index: 1, kind: output, shape index: {}]
  %s2 = sld [smem:[#allocation0]]
  $region26: #{tpu_custom_call.1} parent=0
    _
  %s4 = ssub.s32 1, %s2
  %s5 = scalar_select 0, %s4, %s2
  $region1: #{tpu_custom_call.1} parent=0
    #allocation3 [shape = 'u8[8192]{0}', space=vmem, size = 0x2000, scoped, tag = 'input window, operand 0, single buffered']
    #allocation4 [shape = 's32[1]{0}', space=sflag, size = 0x4, scoped, tag = 'scoped memory for tpu_custom_call.1']
    #allocation5 [shape = 's32[1]{0}', space=sflag, size = 0x4, scoped, tag = 'scoped memory for tpu_custom_call.1']
    #allocation6 [shape = 'u8[10240]{0}', space=vmem, size = 0x2800, scoped, tag = 'output window, operand 0, single buffered']
    %6 = vsyncpa [#allocation4], 0
    %7 = vsyncpa [#allocation5], 0
    // Predicated region
    $region2: #{tpu_custom_call.1} parent=1 // pred_check
      _
    $region3: #{tpu_custom_call.1} parent=1 // pred_check_branch
      %9 = sbr.rel (0) target = $region5
    $region4: #{tpu_custom_call.1} parent=1 // pred_region
      %s10 = sadd.s32 0, 0
      %s11 = smul.u32 8, %s10
      %s13 = ssub.s32 256, 256
      %14 = vsyncadd [#allocation4], %s13
      %s15 = smul.addr %s11, 32
      %s16 = scalar_lea.hbm %s0, %s15
      %s18 = sshll.u32 [#allocation3], 4
      %s19 = int_to_ptr.vmem [resolvable:$true] %s18
      %21 = dma.hbm_to_vmem [thread:$0]  %s16, 256, %s19, [#allocation4]
    $region5: #{tpu_custom_call.1} parent=1 // pred_fallthru
      _
    // Predicated region
    $region6: #{tpu_custom_call.1} parent=1 // pred_check
      _
    $region7: #{tpu_custom_call.1} parent=1 // pred_check_branch
      %23 = sbr.rel (0) target = $region9
    $region8: #{tpu_custom_call.1} parent=1 // pred_region
      %24 = dma.done [#allocation4], 256
    $region9: #{tpu_custom_call.1} parent=1 // pred_fallthru
      _
    %s25 = sadd.s32 0, 0
    %s26 = smul.u32 8, %s25
    %p27 = scmp.eq.s32.totalorder 0, 0
    // Predicated region
    $region10: #{tpu_custom_call.1} parent=1 // pred_check
      %p28 = pneg %p27
    $region11: #{tpu_custom_call.1} parent=1 // pred_check_branch
      %30 = sbr.rel (%p28) target = $region13
    $region12: #{tpu_custom_call.1} parent=1 // pred_region
      %s31 = scalar_lea.smem [#allocation2], 0
      %32 = sst [smem:[%s31]] 0.0
    $region13: #{tpu_custom_call.1} parent=1 // pred_fallthru
      _
    %v33 = vld [vmem:[#allocation3] sm:$0xff]
    %v34 = vld [vmem:[#allocation3 + $0x8] sm:$0xff]
    %v37 = vcombine.high %v33, %v33
    %v39 = vunpack.c.l.s4 1983009808
    %v40 = vunpack.c.0.s8 %v39
    %v41 = vlaneseq
    %v42 = vshrl.u32 %v41, 7
    %v43 = vsub.s32 %v40, %v42
    %v44 = vrot.slane %v33, %v43
    %v46 = vunpack.c.l.s4 1983009808
    %v47 = vunpack.c.0.s8 %v46
    %v48 = vlaneseq
    %v49 = vshrl.u32 %v48, 7
    %v50 = vsub.s32 %v47, %v49
    %v51 = vrot.slane %v37, %v50
    %v52 = vcombine.high %v44, %v44
    %v53 = vcombine.high %v51, %v51
    %v54 = vcombine.high %v34, %v34
    %v56 = vunpack.c.l.s4 1983009808
    %v57 = vunpack.c.0.s8 %v56
    %v58 = vlaneseq
    %v59 = vshrl.u32 %v58, 7
    %v60 = vsub.s32 %v57, %v59
    %v61 = vrot.slane %v34, %v60
    %v63 = vunpack.c.l.s4 1983009808
    %v64 = vunpack.c.0.s8 %v63
    %v65 = vlaneseq
    %v66 = vshrl.u32 %v65, 7
    %v67 = vsub.s32 %v64, %v66
    %v68 = vrot.slane %v54, %v67
    %v69 = vcombine.high %v61, %v61
    %v70 = vcombine.high %v68, %v68
    %vm79 = vcmask 1041408
    %v80 = vsel %vm79, %v44, 0.0
    %v81 = vrot.slane %v80, 4
    %v82 = vadd.f32 %v80, %v81
    %v83 = vrot.slane %v82, 2
    %v84 = vadd.f32 %v82, %v83
    %v85 = vrot.slane %v84, 1
    %v86 = vadd.f32 %v84, %v85
    %v87 = vsel %vm79, %v52, 0.0
    %v88 = vrot.slane %v87, 4
    %v89 = vadd.f32 %v87, %v88
    %v90 = vrot.slane %v89, 2
    %v91 = vadd.f32 %v89, %v90
    %v92 = vrot.slane %v91, 1
    %v93 = vadd.f32 %v91, %v92
    %v94 = vsel %vm79, %v51, 0.0
    %v95 = vrot.slane %v94, 4
    %v96 = vadd.f32 %v94, %v95
    %v97 = vrot.slane %v96, 2
    %v98 = vadd.f32 %v96, %v97
    %v99 = vrot.slane %v98, 1
    %v100 = vadd.f32 %v98, %v99
    %v101 = vsel %vm79, %v53, 0.0
    %v102 = vrot.slane %v101, 4
    %v103 = vadd.f32 %v101, %v102
    %v104 = vrot.slane %v103, 2
    %v105 = vadd.f32 %v103, %v104
    %v106 = vrot.slane %v105, 1
    %v107 = vadd.f32 %v105, %v106
    %v108 = vsel %vm79, %v61, 0.0
    %v109 = vrot.slane %v108, 4
    %v110 = vadd.f32 %v108, %v109
    %v111 = vrot.slane %v110, 2
    %v112 = vadd.f32 %v110, %v111
    %v113 = vrot.slane %v112, 1
    %v114 = vadd.f32 %v112, %v113
    %v115 = vsel %vm79, %v69, 0.0
    %v116 = vrot.slane %v115, 4
    %v117 = vadd.f32 %v115, %v116
    %v118 = vrot.slane %v117, 2
    %v119 = vadd.f32 %v117, %v118
    %v120 = vrot.slane %v119, 1
    %v121 = vadd.f32 %v119, %v120
    %v122 = vsel %vm79, %v68, 0.0
    %v123 = vrot.slane %v122, 4
    %v124 = vadd.f32 %v122, %v123
    %v125 = vrot.slane %v124, 2
    %v126 = vadd.f32 %v124, %v125
    %v127 = vrot.slane %v126, 1
    %v128 = vadd.f32 %v126, %v127
    %v129 = vsel %vm79, %v70, 0.0
    %v130 = vrot.slane %v129, 4
    %v131 = vadd.f32 %v129, %v130
    %v132 = vrot.slane %v131, 2
    %v133 = vadd.f32 %v131, %v132
    %v134 = vrot.slane %v133, 1
    %v135 = vadd.f32 %v133, %v134
    %v136 = vrcp.pop 2.0
    %v137 = vmul.f32 %v86, %v136
    %v138 = vmul.f32 %v93, %v136
    %v139 = vmul.f32 %v100, %v136
    %v140 = vmul.f32 %v107, %v136
    %v141 = vmul.f32 %v114, %v136
    %v142 = vmul.f32 %v121, %v136
    %v143 = vmul.f32 %v128, %v136
    %v144 = vmul.f32 %v135, %v136
    %v153 = vcombine.low %v137, %v138
    %v154 = vcombine.low %v139, %v140
    %v156 = vunpack.c.l.s4 1983009808
    %v157 = vunpack.c.0.s8 %v156
    %v158 = vlaneseq
    %v159 = vshrl.u32 %v158, 7
    %v160 = vsub.s32 %v157, %v159
    %v161 = vrot.slane %v153, %v160
    %v163 = vunpack.c.l.s4 1983009808
    %v164 = vunpack.c.0.s8 %v163
    %v165 = vlaneseq
    %v166 = vshrl.u32 %v165, 7
    %v167 = vsub.s32 %v164, %v166
    %v168 = vrot.slane %v154, %v167
    %v169 = vcombine.low %v161, %v168
    %v170 = vcombine.low %v141, %v142
    %v171 = vcombine.low %v143, %v144
    %v173 = vunpack.c.l.s4 1983009808
    %v174 = vunpack.c.0.s8 %v173
    %v175 = vlaneseq
    %v176 = vshrl.u32 %v175, 7
    %v177 = vsub.s32 %v174, %v176
    %v178 = vrot.slane %v170, %v177
    %v180 = vunpack.c.l.s4 1983009808
    %v181 = vunpack.c.0.s8 %v180
    %v182 = vlaneseq
    %v183 = vshrl.u32 %v182, 7
    %v184 = vsub.s32 %v181, %v183
    %v185 = vrot.slane %v171, %v184
    %v186 = vcombine.low %v178, %v185
    %v189 = vsub.f32 %v33, %v169
    %v190 = vsub.f32 %v34, %v186
    %v191 = vmul.f32 %v189, %v189
    %v192 = vmul.f32 %v190, %v190
    %v195 = vcombine.high %v191, %v191
    %v197 = vunpack.c.l.s4 1983009808
    %v198 = vunpack.c.0.s8 %v197
    %v199 = vlaneseq
    %v200 = vshrl.u32 %v199, 7
    %v201 = vsub.s32 %v198, %v200
    %v202 = vrot.slane %v191, %v201
    %v204 = vunpack.c.l.s4 1983009808
    %v205 = vunpack.c.0.s8 %v204
    %v206 = vlaneseq
    %v207 = vshrl.u32 %v206, 7
    %v208 = vsub.s32 %v205, %v207
    %v209 = vrot.slane %v195, %v208
    %v210 = vcombine.high %v202, %v202
    %v211 = vcombine.high %v209, %v209
    %v212 = vcombine.high %v192, %v192
    %v214 = vunpack.c.l.s4 1983009808
    %v215 = vunpack.c.0.s8 %v214
    %v216 = vlaneseq
    %v217 = vshrl.u32 %v216, 7
    %v218 = vsub.s32 %v215, %v217
    %v219 = vrot.slane %v192, %v218
    %v221 = vunpack.c.l.s4 1983009808
    %v222 = vunpack.c.0.s8 %v221
    %v223 = vlaneseq
    %v224 = vshrl.u32 %v223, 7
    %v225 = vsub.s32 %v222, %v224
    %v226 = vrot.slane %v212, %v225
    %v227 = vcombine.high %v219, %v219
    %v228 = vcombine.high %v226, %v226
    %v237 = vsel %vm79, %v202, 0.0
    %v238 = vrot.slane %v237, 4
    %v239 = vadd.f32 %v237, %v238
    %v240 = vrot.slane %v239, 2
    %v241 = vadd.f32 %v239, %v240
    %v242 = vrot.slane %v241, 1
    %v243 = vadd.f32 %v241, %v242
    %v244 = vsel %vm79, %v210, 0.0
    %v245 = vrot.slane %v244, 4
    %v246 = vadd.f32 %v244, %v245
    %v247 = vrot.slane %v246, 2
    %v248 = vadd.f32 %v246, %v247
    %v249 = vrot.slane %v248, 1
    %v250 = vadd.f32 %v248, %v249
    %v251 = vsel %vm79, %v209, 0.0
    %v252 = vrot.slane %v251, 4
    %v253 = vadd.f32 %v251, %v252
    %v254 = vrot.slane %v253, 2
    %v255 = vadd.f32 %v253, %v254
    %v256 = vrot.slane %v255, 1
    %v257 = vadd.f32 %v255, %v256
    %v258 = vsel %vm79, %v211, 0.0
    %v259 = vrot.slane %v258, 4
    %v260 = vadd.f32 %v258, %v259
    %v261 = vrot.slane %v260, 2
    %v262 = vadd.f32 %v260, %v261
    %v263 = vrot.slane %v262, 1
    %v264 = vadd.f32 %v262, %v263
    %v265 = vsel %vm79, %v219, 0.0
    %v266 = vrot.slane %v265, 4
    %v267 = vadd.f32 %v265, %v266
    %v268 = vrot.slane %v267, 2
    %v269 = vadd.f32 %v267, %v268
    %v270 = vrot.slane %v269, 1
    %v271 = vadd.f32 %v269, %v270
    %v272 = vsel %vm79, %v227, 0.0
    %v273 = vrot.slane %v272, 4
    %v274 = vadd.f32 %v272, %v273
    %v275 = vrot.slane %v274, 2
    %v276 = vadd.f32 %v274, %v275
    %v277 = vrot.slane %v276, 1
    %v278 = vadd.f32 %v276, %v277
    %v279 = vsel %vm79, %v226, 0.0
    %v280 = vrot.slane %v279, 4
    %v281 = vadd.f32 %v279, %v280
    %v282 = vrot.slane %v281, 2
    %v283 = vadd.f32 %v281, %v282
    %v284 = vrot.slane %v283, 1
    %v285 = vadd.f32 %v283, %v284
    %v286 = vsel %vm79, %v228, 0.0
    %v287 = vrot.slane %v286, 4
    %v288 = vadd.f32 %v286, %v287
    %v289 = vrot.slane %v288, 2
    %v290 = vadd.f32 %v288, %v289
    %v291 = vrot.slane %v290, 1
    %v292 = vadd.f32 %v290, %v291
    %v293 = vmul.f32 %v243, %v136
    %v294 = vmul.f32 %v250, %v136
    %v295 = vmul.f32 %v257, %v136
    %v296 = vmul.f32 %v264, %v136
    %v297 = vmul.f32 %v271, %v136
    %v298 = vmul.f32 %v278, %v136
    %v299 = vmul.f32 %v285, %v136
    %v300 = vmul.f32 %v292, %v136
    %v301 = vadd.f32 %v293, 1e-08
    %v302 = vadd.f32 %v294, 1e-08
    %v303 = vadd.f32 %v295, 1e-08
    %v304 = vadd.f32 %v296, 1e-08
    %v305 = vadd.f32 %v297, 1e-08
    %v306 = vadd.f32 %v298, 1e-08
    %v307 = vadd.f32 %v299, 1e-08
    %v308 = vadd.f32 %v300, 1e-08
    %v309 = vrsqrt.pop %v301
    %v310 = vmul.f32 %v301, %v309
    %vm311 = vcmp.eq.f32.partialorder %v301, inf
    %v312 = vsel %vm311, %v301, %v310
    %vm313 = vcmp.eq.f32.partialorder %v301, 0.0
    %v314 = vand.u32 %v301, 2147483648
    %v315 = vsel %vm313, %v314, %v312
    %v316 = vrsqrt.pop %v302
    %v317 = vmul.f32 %v302, %v316
    %vm318 = vcmp.eq.f32.partialorder %v302, inf
    %v319 = vsel %vm318, %v302, %v317
    %vm320 = vcmp.eq.f32.partialorder %v302, 0.0
    %v321 = vand.u32 %v302, 2147483648
    %v322 = vsel %vm320, %v321, %v319
    %v323 = vrsqrt.pop %v303
    %v324 = vmul.f32 %v303, %v323
    %vm325 = vcmp.eq.f32.partialorder %v303, inf
    %v326 = vsel %vm325, %v303, %v324
    %vm327 = vcmp.eq.f32.partialorder %v303, 0.0
    %v328 = vand.u32 %v303, 2147483648
    %v329 = vsel %vm327, %v328, %v326
    %v330 = vrsqrt.pop %v304
    %v331 = vmul.f32 %v304, %v330
    %vm332 = vcmp.eq.f32.partialorder %v304, inf
    %v333 = vsel %vm332, %v304, %v331
    %vm334 = vcmp.eq.f32.partialorder %v304, 0.0
    %v335 = vand.u32 %v304, 2147483648
    %v336 = vsel %vm334, %v335, %v333
    %v337 = vrsqrt.pop %v305
    %v338 = vmul.f32 %v305, %v337
    %vm339 = vcmp.eq.f32.partialorder %v305, inf
    %v340 = vsel %vm339, %v305, %v338
    %vm341 = vcmp.eq.f32.partialorder %v305, 0.0
    %v342 = vand.u32 %v305, 2147483648
    %v343 = vsel %vm341, %v342, %v340
    %v344 = vrsqrt.pop %v306
    %v345 = vmul.f32 %v306, %v344
    %vm346 = vcmp.eq.f32.partialorder %v306, inf
    %v347 = vsel %vm346, %v306, %v345
    %vm348 = vcmp.eq.f32.partialorder %v306, 0.0
    %v349 = vand.u32 %v306, 2147483648
    %v350 = vsel %vm348, %v349, %v347
    %v351 = vrsqrt.pop %v307
    %v352 = vmul.f32 %v307, %v351
    %vm353 = vcmp.eq.f32.partialorder %v307, inf
    %v354 = vsel %vm353, %v307, %v352
    %vm355 = vcmp.eq.f32.partialorder %v307, 0.0
    %v356 = vand.u32 %v307, 2147483648
    %v357 = vsel %vm355, %v356, %v354
    %v358 = vrsqrt.pop %v308
    %v359 = vmul.f32 %v308, %v358
    %vm360 = vcmp.eq.f32.partialorder %v308, inf
    %v361 = vsel %vm360, %v308, %v359
    %vm362 = vcmp.eq.f32.partialorder %v308, 0.0
    %v363 = vand.u32 %v308, 2147483648
    %v364 = vsel %vm362, %v363, %v361
    %vm365 = vcmask 1040384
    %v366 = vsel %vm365, %v315, 0.0
    %v367 = vsel %vm365, %v322, 0.0
    %v368 = vadd.f32 %v366, %v367
    %v369 = vsel %vm365, %v329, 0.0
    %v370 = vadd.f32 %v368, %v369
    %v371 = vsel %vm365, %v336, 0.0
    %v372 = vadd.f32 %v370, %v371
    %v373 = vsel %vm365, %v343, 0.0
    %v374 = vadd.f32 %v372, %v373
    %v375 = vsel %vm365, %v350, 0.0
    %v376 = vadd.f32 %v374, %v375
    %v377 = vsel %vm365, %v357, 0.0
    %v378 = vadd.f32 %v376, %v377
    %v379 = vsel %vm365, %v364, 0.0
    %v380 = vadd.f32 %v378, %v379
    %381 = vadd.xlane.f32.xlu0 %v380
    %v382 = vpop.xlane.xlu0 %381
    %v383 = vrot.slane %v382, 4
    %v384 = vadd.f32 %v382, %v383
    %v385 = vrot.slane %v384, 2
    %v386 = vadd.f32 %v384, %v385
    %v387 = vrot.slane %v386, 1
    %v388 = vadd.f32 %v386, %v387
    %s389 = vtos %v388
    %s390 = sld [smem:[#allocation2]]
    %s391 = sadd.f32 %s390, %s389
    %s392 = scalar_lea.smem [#allocation2], 0
    %393 = sst [smem:[%s392]] %s391
    %s394 = smul.u32 0, 1024
    %s395 = sshra.s32 %s394, 7
    %s396 = sand.u32 %s394, 127
    %s397 = smul.addr %s395, 2
    %s398 = scalar_lea.vmem [#allocation6], %s397
    %399 = vst [vmem:[%s398] sm:$0xff] %v33
    %400 = vst [vmem:[%s398 + $0x8] sm:$0xff] %v34
    // Predicated region
    $region14: #{tpu_custom_call.1} parent=1 // pred_check
      %p401 = pneg %p27
    $region15: #{tpu_custom_call.1} parent=1 // pred_check_branch
      %403 = sbr.rel (%p401) target = $region17
    $region16: #{tpu_custom_call.1} parent=1 // pred_region
      %s404 = sld [smem:[#allocation2]]
      %s405 = smul.f32 %s404, 0.0009765625
      %v406 = vstv %s405
      %407 = vst [vmem:[#allocation6 + $0x10] sm:$0xf] %v406
    $region17: #{tpu_custom_call.1} parent=1 // pred_fallthru
      _
    // Predicated region
    $region18: #{tpu_custom_call.1} parent=1 // pred_check
      _
    $region19: #{tpu_custom_call.1} parent=1 // pred_check_branch
      %409 = sbr.rel (0) target = $region21
    $region20: #{tpu_custom_call.1} parent=1 // pred_region
      %s411 = ssub.s32 320, 320
      %412 = vsyncadd [#allocation5], %s411
      %s414 = sshll.u32 [#allocation6], 4
      %s415 = int_to_ptr.vmem [resolvable:$true] %s414
      %417 = dma.vmem_to_hbm [thread:$0]  %s415, 320, %s1, [#allocation5]
    $region21: #{tpu_custom_call.1} parent=1 // pred_fallthru
      _
    // Predicated region
    $region22: #{tpu_custom_call.1} parent=1 // pred_check
      _
    $region23: #{tpu_custom_call.1} parent=1 // pred_check_branch
      %419 = sbr.rel (0) target = $region25
    $region24: #{tpu_custom_call.1} parent=1 // pred_region
      %420 = dma.done [#allocation5], 320
    $region25: #{tpu_custom_call.1} parent=1 // pred_fallthru
      _
    %421 = vsyncpa [#allocation4], 1
    %422 = vsyncpa [#allocation5], 1

</llo_original>
